<compile_context>
chip_gen: v6e
topology: v6e:2x2x1
jax: 0.10.0
libtpu: 0.0.40
codegen_flags: <defaults>
</compile_context>

<pallas_src>
import functools
import math

import jax
import jax.numpy as jnp
from jax.experimental import pallas as pl
from jax.experimental.pallas import tpu as pltpu


def _round_up(n, m):
    return ((n + m - 1) // m) * m


def _time_embedding_kernel_chebyshev(x_ref, o_ref, *, n_freqs, f_scale, t_scale):
    """Lane-dense tile: x (1, T) -> o (1 + 2F, T).

    Row 0      : 2*(x/t_scale) - 1
    Rows 1..F  : cos(k*w), k = 0..F-1,  w = x * f_scale / t_scale
    Rows F+1.. : sin(k*w)
    Harmonics k>=2 come from the Chebyshev recurrence
        cos((k+1)w) = 2 cos(w) cos(kw) - cos((k-1)w)   (same for sin),
    so only one cos + one sin polynomial expansion per element.
    """
    x = x_ref[...]                                          # (1, T)
    affine = x * jnp.float32(2.0 / t_scale) - jnp.float32(1.0)
    if n_freqs == 0:
        o_ref[...] = affine
        return

    cos_rows = [jnp.ones_like(x)]                           # cos(0) = 1
    sin_rows = [jnp.zeros_like(x)]                          # sin(0) = 0
    if n_freqs > 1:
        w = x * jnp.float32(f_scale / t_scale)              # folded constants
        c1 = jnp.cos(w)
        s1 = jnp.sin(w)
        cos_rows.append(c1)
        sin_rows.append(s1)
        two_c1 = c1 + c1
        ck_2, ck_1 = cos_rows[0], c1
        sk_2, sk_1 = sin_rows[0], s1
        for _ in range(2, n_freqs):                         # static unroll (F <= 64)
            ck = two_c1 * ck_1 - ck_2
            sk = two_c1 * sk_1 - sk_2
            cos_rows.append(ck)
            sin_rows.append(sk)
            ck_2, ck_1 = ck_1, ck
            sk_2, sk_1 = sk_1, sk

    # One aligned full-block store (no sublane-misaligned section stores).
    o_ref[...] = jnp.concatenate([affine] + cos_rows + sin_rows, axis=0)


def _time_embedding_kernel_direct(coef_ref, x_ref, o_ref, *, t_scale):
    """Fallback for large F: direct cos/sin on the (F, T) phase.

    coef_ref (F, 1) = arange(F) * f_scale / t_scale is VMEM-resident across the
    whole grid (constant index_map), so the iota/scale is not rebuilt per step.
    """
    # TODO(synk): for very large n_freqs, chunk over frequency blocks (second
    # grid axis or fori_loop) to bound the live (F, T) intermediates.
    x = x_ref[...]                                          # (1, T)
    affine = x * jnp.float32(2.0 / t_scale) - jnp.float32(1.0)
    phase = coef_ref[...] * x                               # (F, T) outer product
    o_ref[...] = jnp.concatenate([affine, jnp.cos(phase), jnp.sin(phase)], axis=0)


def _choose_tile_n(n_rows, out_dim):
    """Lane-tile width: as large as the (double-buffered) VMEM budget allows."""
    if n_rows < 128:
        # Tiny problem: one full-extent block (block dims == array dims).
        return n_rows
    # Per grid step: 2 buffers * ((1 + out_dim) * tile_n * 4 B).  Keep under
    # ~8 MiB -> fits scoped-VMEM defaults on v5e/v6e/v7x without raising
    # vmem_limit_bytes.
    budget = 8 * 1024 * 1024
    t = budget // (8 * (out_dim + 1))
    t = (t // 128) * 128
    t = max(128, min(t, 32768))
    # v7x megacore: keep at least 2 grid steps when there is enough work so the
    # "parallel" axis splits across both TensorCores.
    if n_rows >= 256:
        t = min(t, _round_up(pl.cdiv(n_rows, 2), 128))
    # Never let the block exceed the array; trailing partial blocks are handled
    # by Pallas' masked edge-block reads/writes.
    t = min(t, (n_rows // 128) * 128)
    return t


@functools.partial(jax.jit, static_argnums=(1, 2, 3, 4))
def _time_embedding_impl(x, out_dim, f_scale, t_scale, transpose_output):
    assert out_dim % 2 == 1, "out dimension of TimeEmbedding must be odd"
    n_freqs = (out_dim - 1) // 2

    x = jnp.asarray(x, jnp.float32)
    # Mirror torch: if last dim != 1, unsqueeze(-1).
    if x.ndim == 0 or x.shape[-1] != 1:
        x = x[..., None]
    lead_shape = x.shape[:-1]
    n_rows = math.prod(lead_shape) if lead_shape else 1

    # Flatten to a single lane-major row (free reshape, no padding op).
    x_row = x.reshape(1, n_rows)

    tile_n = _choose_tile_n(n_rows, out_dim)
    grid = (pl.cdiv(n_rows, tile_n),)

    use_recurrence = n_freqs <= 64
    if use_recurrence:
        kernel = functools.partial(
            _time_embedding_kernel_chebyshev,
            n_freqs=n_freqs, f_scale=f_scale, t_scale=t_scale)
        in_specs = [pl.BlockSpec((1, tile_n), lambda i: (0, i))]
        args = (x_row,)
        transc = 2 * n_rows if n_freqs > 1 else 0
    else:
        coef = (jnp.arange(n_freqs, dtype=jnp.float32)
                * jnp.float32(f_scale / t_scale)).reshape(n_freqs, 1)
        kernel = functools.partial(_time_embedding_kernel_direct, t_scale=t_scale)
        in_specs = [pl.BlockSpec((n_freqs, 1), lambda i: (0, 0)),   # resident coef
                    pl.BlockSpec((1, tile_n), lambda i: (0, i))]
        args = (coef, x_row)
        transc = 2 * n_rows * n_freqs

    cost = pl.CostEstimate(
        flops=int(n_rows * (2 + 4 * max(n_freqs, 1))),
        transcendentals=int(transc),
        bytes_accessed=int(4 * n_rows * (1 + out_dim)),
    )

    out_dn = pl.pallas_call(
        kernel,
        out_shape=jax.ShapeDtypeStruct((out_dim, n_rows), jnp.float32),
        grid=grid,
        in_specs=in_specs,
        out_specs=pl.BlockSpec((out_dim, tile_n), lambda i: (0, i)),
        compiler_params=pltpu.CompilerParams(
            dimension_semantics=("parallel",)),
        cost_estimate=cost,
    )(*args)

    if not transpose_output:
        # Lane-dense (out_dim, N): preferred when the consumer (e.g. a matmul)
        # can absorb the transpose for free.
        return out_dn
    # Module-compatible (..., out_dim).  Kept inside the jitted wrapper so it
    # can fuse with a downstream consumer when this function is inlined.
    return out_dn.T.reshape(*lead_shape, out_dim)


def time_embedding(x, out_dim, f_scale=1.0, t_scale=1.0, transpose_output=True):
    """Pallas TimeEmbedding forward. x: (...,) or (..., 1) -> (..., out_dim)."""
    return _time_embedding_impl(x, int(out_dim), float(f_scale), float(t_scale),
                                bool(transpose_output))


def _reference(x, out_dim, f_scale=1.0, t_scale=1.0):
    n_freqs = (out_dim - 1) // 2
    x = jnp.asarray(x, jnp.float32)
    if x.ndim == 0 or x.shape[-1] != 1:
        x = x[..., None]
    v = x / t_scale
    t_range = jnp.arange(n_freqs, dtype=jnp.float32)
    x_rep = jnp.repeat(v, n_freqs, axis=-1) if n_freqs > 0 else v[..., :0]
    x_cos = jnp.cos(x_rep * f_scale * t_range)
    x_sin = jnp.sin(x_rep * f_scale * t_range)
    return jnp.concatenate([v * 2.0 - 1.0, x_cos, x_sin], axis=-1)


if __name__ == "__main__":
    key = jax.random.PRNGKey(0)

    # Main test: time values per (batch, seq).
    batch, seq = 2, 8
    out_dim = 9          # odd -> n_freqs = 4 (exercises the Chebyshev recurrence)
    f_scale, t_scale = 2.0, 4.0

    x = jax.random.uniform(key, (batch, seq), dtype=jnp.float32) * 10.0
    out = jax.block_until_ready(
        time_embedding(x, out_dim, f_scale=f_scale, t_scale=t_scale))
    ref = _reference(x, out_dim, f_scale=f_scale, t_scale=t_scale)
    assert out.shape == (batch, seq, out_dim), out.shape
    assert jnp.allclose(out, ref, atol=1e-5, rtol=1e-5), float(
        jnp.max(jnp.abs(out - ref)))

    # Lane-dense layout option (consumer absorbs the transpose).
    out_dn = jax.block_until_ready(
        time_embedding(x, out_dim, f_scale=f_scale, t_scale=t_scale,
                       transpose_output=False))
    assert out_dn.shape == (out_dim, batch * seq), out_dn.shape
    assert jnp.allclose(out_dn, ref.reshape(-1, out_dim).T, atol=1e-5, rtol=1e-5)

    # Ragged-N test (N=150, not a multiple of 128 -> multi-step grid with a
    # masked trailing edge block) with trailing singleton dim.
    x2 = jax.random.normal(jax.random.PRNGKey(1), (3, 50, 1), dtype=jnp.float32)
    out2 = jax.block_until_ready(time_embedding(x2, 5, f_scale=1.5, t_scale=0.5))
    ref2 = _reference(x2, 5, f_scale=1.5, t_scale=0.5)
    assert out2.shape == (3, 50, 5), out2.shape
    assert jnp.allclose(out2, ref2, atol=1e-5, rtol=1e-5), float(
        jnp.max(jnp.abs(out2 - ref2)))

    print("KERNEL_OK")
</pallas_src>

<mosaic_0001>
module attributes {stable_mosaic.version = 11 : i64} {
  func.func @_time_embedding_kernel_chebyshev(%arg0: i32, %arg1: memref<1x16xf32, #tpu.memory_space<vmem>>, %arg2: memref<9x16xf32, #tpu.memory_space<vmem>>) attributes {dimension_semantics = [#tpu.dimension_semantics<parallel>], iteration_bounds = array<i64: 1>, scalar_prefetch = 0 : i64, scratch_operands = 0 : i64, tpu.core_type = #tpu.core_type<tc>, window_params = [{transform_indices = @transform_0, window_bounds = array<i64: 1, 16>}, {transform_indices = @transform_1, window_bounds = array<i64: 9, 16>}]} {
    %c0 = arith.constant 0 : index
    %c0_0 = arith.constant 0 : index
    %0 = vector.load %arg1[%c0, %c0_0] : memref<1x16xf32, #tpu.memory_space<vmem>>, vector<1x16xf32>
    %cst = arith.constant 5.000000e-01 : f32
    %1 = vector.broadcast %cst : f32 to vector<1x16xf32>
    %2 = arith.mulf %0, %1 : vector<1x16xf32>
    %cst_1 = arith.constant 1.000000e+00 : f32
    %3 = vector.broadcast %cst_1 : f32 to vector<1x16xf32>
    %4 = arith.subf %2, %3 : vector<1x16xf32>
    %cst_2 = arith.constant 1.000000e+00 : f32
    %5 = vector.broadcast %cst_2 : f32 to vector<1x16xf32>
    %cst_3 = arith.constant 0.000000e+00 : f32
    %6 = vector.broadcast %cst_3 : f32 to vector<1x16xf32>
    %cst_4 = arith.constant 5.000000e-01 : f32
    %7 = vector.broadcast %cst_4 : f32 to vector<1x16xf32>
    %8 = arith.mulf %0, %7 : vector<1x16xf32>
    %9 = math.cos %8 : vector<1x16xf32>
    %10 = math.sin %8 : vector<1x16xf32>
    %11 = arith.addf %9, %9 : vector<1x16xf32>
    %12 = arith.mulf %11, %9 : vector<1x16xf32>
    %13 = arith.subf %12, %5 : vector<1x16xf32>
    %14 = arith.mulf %11, %10 : vector<1x16xf32>
    %15 = arith.subf %14, %6 : vector<1x16xf32>
    %16 = arith.mulf %11, %13 : vector<1x16xf32>
    %17 = arith.subf %16, %9 : vector<1x16xf32>
    %18 = arith.mulf %11, %15 : vector<1x16xf32>
    %19 = arith.subf %18, %10 : vector<1x16xf32>
    %20 = tpu.concatenate %4, %5, %9, %13, %17, %6, %10, %15, %19 in 0 : vector<1x16xf32>, vector<1x16xf32>, vector<1x16xf32>, vector<1x16xf32>, vector<1x16xf32>, vector<1x16xf32>, vector<1x16xf32>, vector<1x16xf32>, vector<1x16xf32> -> vector<9x16xf32>
    %c0_5 = arith.constant 0 : index
    %c0_6 = arith.constant 0 : index
    %21 = vector.load %arg2[%c0_5, %c0_6] : memref<9x16xf32, #tpu.memory_space<vmem>>, vector<9x16xf32>
    tpu.vector_store %arg2[%c0_5, %c0_6], %20 {strides = array<i32>} : memref<9x16xf32, #tpu.memory_space<vmem>>, vector<9x16xf32>,
    return
  }
  func.func @transform_0(%arg0: i32) -> (i32, i32) {
    %c0_i32 = arith.constant 0 : i32
    %c0_i32_0 = arith.constant 0 : i32
    return %c0_i32, %arg0 : i32, i32
  }
  func.func @transform_1(%arg0: i32) -> (i32, i32) {
    %c0_i32 = arith.constant 0 : i32
    %c0_i32_0 = arith.constant 0 : i32
    return %c0_i32, %arg0 : i32, i32
  }
}

</mosaic_0001>

<llo_original>
// kernel: _time_embedding_impl.1
$region0: #{_time_embedding_impl.1}
  #allocation0 [shape = 'u32[]', space=smem, size = 0x4, offset = 0x4, fixed_abs, tag = 'smem constant byte address 0x4 - core index']
  #allocation1 [shape = 'u32[144,128]{1,0:T(1,128)}', space=vmem, size = 0x12000, scoped, tag = 'internal scratch']
  %s0 = inlined_call_operand.vmem [shape: f32[1,16], index: 0, kind: input, shape index: {}]
  %s1 = inlined_call_operand.vmem [shape: f32[9,16], index: 1, kind: output, shape index: {}]
  %s2 = sld [smem:[#allocation0]]
  $region14: #{_time_embedding_impl.1} parent=0
    _
  %s4 = ssub.s32 1, %s2
  %s5 = scalar_select 0, %s4, %s2
  // Predicated region
  $region2: #{_time_embedding_impl.1} parent=0 // pred_check
    _
  $region3: #{_time_embedding_impl.1} parent=0 // pred_check_branch
    %7 = sbr.rel (0) target = $region5
  $region4: #{_time_embedding_impl.1} parent=0 // pred_region
    _
  $region5: #{_time_embedding_impl.1} parent=0 // pred_fallthru
    _
  %v8 = vld [vmem:[%s0] sm:$0x1]
  %v9 = vmul.f32 %v8, 0.5
  %v10 = vsub.f32 %v9, 1.0
  %v11 = vand.u32 2147483647, %v9
  %vm12 = vcmp.le.f32.partialorder %v11, 0.7853982
  %vm13 = vcmp.lt.s32.totalorder %v9, 0
  %v14 = vand.u32 %v9, 2139095040
  %v15 = vshrl.u32 %v14, 23
  %v16 = vsub.s32 %v15, 127
  %v17 = vand.u32 2147483647, %v9
  %v18 = vand.u32 %v17, 8388607
  %v19 = vor.u32 %v18, 8388608
  %v20 = vsub.s32 0, %v19
  %v21 = vadd.s32 %v16, 1
  %vm22 = vcmp.gt.s32.totalorder %v21, 0
  %v23 = vsel %vm22, %v21, 0
  %v24 = vshrl.u32 %v23, 5
  %v25 = vand.u32 %v23, 31
  %v26 = vsub.s32 32, %v25
  %v27 = vshrl.u32 683565275, %v26
  %v28 = vshll.u32 683565275, %v25
  %v29 = vshrl.u32 2475754826, %v26
  %v30 = vor.u32 %v28, %v29
  %v31 = vshll.u32 2475754826, %v25
  %v32 = vshrl.u32 2131351028, %v26
  %v33 = vor.u32 %v31, %v32
  %v34 = vshll.u32 2131351028, %v25
  %v35 = vshrl.u32 2102212464, %v26
  %v36 = vor.u32 %v34, %v35
  %v37 = vshll.u32 2102212464, %v25
  %v38 = vshrl.u32 920167782, %v26
  %v39 = vor.u32 %v37, %v38
  %v40 = vshll.u32 920167782, %v25
  %v41 = vshrl.u32 1326507024, %v26
  %v42 = vor.u32 %v40, %v41
  %vm43 = vcmp.lt.s32.totalorder %v24, 1
  %vm44 = vcmp.lt.s32.totalorder %v24, 2
  %vm45 = vcmp.lt.s32.totalorder %v24, 3
  %vm46 = vcmp.lt.s32.totalorder %v24, 4
  %v47 = vsel %vm43, %v27, %v30
  %v48 = vsel %vm46, %v36, 2102212464
  %v49 = vsel %vm45, %v33, %v48
  %v50 = vsel %vm44, %v47, %v49
  %v51 = vsel %vm43, %v30, %v33
  %v52 = vsel %vm46, %v39, 920167782
  %v53 = vsel %vm45, %v36, %v52
  %v54 = vsel %vm44, %v51, %v53
  %v55 = vsel %vm43, %v33, %v36
  %v56 = vsel %vm46, %v42, 1326507024
  %v57 = vsel %vm45, %v39, %v56
  %v58 = vsel %vm44, %v55, %v57
  %v59 = vshll.u32 %v19, 8
  %v60 = vmul.u32.u64.compose %v59, %v58
  %v61 = vextract.low.u32 %v60
  %v62 = vextract.high.u32 %v60
  %v63 = vmul.u32.u64.compose %v59, %v54
  %v64 = vextract.low.u32 %v63
  %v65 = vextract.high.u32 %v63
  %v66 = vmul.u32 %v59, %v50
  %v67 = vadd.s32 %v62, %v64
  %vm68 = vc.u32 %v62, %v64
  %v69 = vadd.s32 %v65, 1
  %v70 = vsel %vm68, %v69, %v65
  %v71 = vadd.s32 %v66, %v70
  %v72 = vadd.s32 %v71, 536870912
  %v73 = vshrl.u32 %v72, 30
  %v74 = vshll.u32 %v73, 30
  %v75 = vsub.s32 %v71, %v74
  %vm76 = vcmp.lt.s32.totalorder %v75, 0
  %v77 = vsub.s32 0, %v75
  %v78 = vsel %vm76, %v77, %v75
  %v79 = vclz %v78
  %v80 = vsub.s32 %v79, 2
  %vm81 = vcmp.gt.s32.totalorder 0, %v80
  %v82 = vsel %vm81, 0, %v80
  %v83 = vsub.s32 32, %v82
  %v84 = vshll.u32 %v75, %v82
  %v85 = vshrl.u32 %v67, %v83
  %v86 = vor.u32 %v84, %v85
  %v87 = vsub.s32 4294967266, %v82
  %v88 = vadd.s32 %v87, 127
  %v89 = vshll.u32 %v88, 23
  %v90 = vor.u32 4788187, %v89
  %v91 = vand.u32 2147483647, %v90
  %v93 = vcvt.s32.f32 %v86
  %v94 = vmul.f32 %v93, %v91
  %v95 = vxor.u32 %v94, 2147483648
  %v96 = vsel %vm13, %v95, %v94
  %v97 = vsub.s32 4, %v73
  %v98 = vsel %vm13, %v97, %v73
  %v99 = vsel %vm12, %v9, %v96
  %v100 = vsel %vm12, 0, %v98
  %v101 = vcosq.f32.pop %v99
  %v102 = vsinq.f32.pop %v99
  %vm103 = vweird.f32 %v9
  %v104 = vand.u32 %v100, 3
  %vm105 = vcmp.lt.s32.totalorder %v104, 2
  %vm106 = vcmp.eq.s32.totalorder %v104, 0
  %v107 = vxor.u32 %v102, 2147483648
  %v108 = vsel %vm106, %v101, %v107
  %vm109 = vcmp.eq.s32.totalorder %v104, 2
  %v110 = vxor.u32 %v101, 2147483648
  %v111 = vsel %vm109, %v110, %v102
  %v112 = vsel %vm105, %v108, %v111
  %v113 = vsel %vm103, nan, %v112
  %v114 = vand.u32 2147483647, %v9
  %vm115 = vcmp.le.f32.partialorder %v114, 0.7853982
  %vm116 = vcmp.lt.s32.totalorder %v9, 0
  %v117 = vand.u32 %v9, 2139095040
  %v118 = vshrl.u32 %v117, 23
  %v119 = vsub.s32 %v118, 127
  %v120 = vand.u32 2147483647, %v9
  %v121 = vand.u32 %v120, 8388607
  %v122 = vor.u32 %v121, 8388608
  %v123 = vsub.s32 0, %v122
  %v124 = vadd.s32 %v119, 1
  %vm125 = vcmp.gt.s32.totalorder %v124, 0
  %v126 = vsel %vm125, %v124, 0
  %v127 = vshrl.u32 %v126, 5
  %v128 = vand.u32 %v126, 31
  %v129 = vsub.s32 32, %v128
  %v130 = vshrl.u32 683565275, %v129
  %v131 = vshll.u32 683565275, %v128
  %v132 = vshrl.u32 2475754826, %v129
  %v133 = vor.u32 %v131, %v132
  %v134 = vshll.u32 2475754826, %v128
  %v135 = vshrl.u32 2131351028, %v129
  %v136 = vor.u32 %v134, %v135
  %v137 = vshll.u32 2131351028, %v128
  %v138 = vshrl.u32 2102212464, %v129
  %v139 = vor.u32 %v137, %v138
  %v140 = vshll.u32 2102212464, %v128
  %v141 = vshrl.u32 920167782, %v129
  %v142 = vor.u32 %v140, %v141
  %v143 = vshll.u32 920167782, %v128
  %v144 = vshrl.u32 1326507024, %v129
  %v145 = vor.u32 %v143, %v144
  %vm146 = vcmp.lt.s32.totalorder %v127, 1
  %vm147 = vcmp.lt.s32.totalorder %v127, 2
  %vm148 = vcmp.lt.s32.totalorder %v127, 3
  %vm149 = vcmp.lt.s32.totalorder %v127, 4
  %v150 = vsel %vm146, %v130, %v133
  %v151 = vsel %vm149, %v139, 2102212464
  %v152 = vsel %vm148, %v136, %v151
  %v153 = vsel %vm147, %v150, %v152
  %v154 = vsel %vm146, %v133, %v136
  %v155 = vsel %vm149, %v142, 920167782
  %v156 = vsel %vm148, %v139, %v155
  %v157 = vsel %vm147, %v154, %v156
  %v158 = vsel %vm146, %v136, %v139
  %v159 = vsel %vm149, %v145, 1326507024
  %v160 = vsel %vm148, %v142, %v159
  %v161 = vsel %vm147, %v158, %v160
  %v162 = vshll.u32 %v122, 8
  %v163 = vmul.u32.u64.compose %v162, %v161
  %v164 = vextract.low.u32 %v163
  %v165 = vextract.high.u32 %v163
  %v166 = vmul.u32.u64.compose %v162, %v157
  %v167 = vextract.low.u32 %v166
  %v168 = vextract.high.u32 %v166
  %v169 = vmul.u32 %v162, %v153
  %v170 = vadd.s32 %v165, %v167
  %vm171 = vc.u32 %v165, %v167
  %v172 = vadd.s32 %v168, 1
  %v173 = vsel %vm171, %v172, %v168
  %v174 = vadd.s32 %v169, %v173
  %v175 = vadd.s32 %v174, 536870912
  %v176 = vshrl.u32 %v175, 30
  %v177 = vshll.u32 %v176, 30
  %v178 = vsub.s32 %v174, %v177
  %vm179 = vcmp.lt.s32.totalorder %v178, 0
  %v180 = vsub.s32 0, %v178
  %v181 = vsel %vm179, %v180, %v178
  %v182 = vclz %v181
  %v183 = vsub.s32 %v182, 2
  %vm184 = vcmp.gt.s32.totalorder 0, %v183
  %v185 = vsel %vm184, 0, %v183
  %v186 = vsub.s32 32, %v185
  %v187 = vshll.u32 %v178, %v185
  %v188 = vshrl.u32 %v170, %v186
  %v189 = vor.u32 %v187, %v188
  %v190 = vsub.s32 4294967266, %v185
  %v191 = vadd.s32 %v190, 127
  %v192 = vshll.u32 %v191, 23
  %v193 = vor.u32 4788187, %v192
  %v194 = vand.u32 2147483647, %v193
  %v196 = vcvt.s32.f32 %v189
  %v197 = vmul.f32 %v196, %v194
  %v198 = vxor.u32 %v197, 2147483648
  %v199 = vsel %vm116, %v198, %v197
  %v200 = vsub.s32 4, %v176
  %v201 = vsel %vm116, %v200, %v176
  %v202 = vsel %vm115, %v9, %v199
  %v203 = vsel %vm115, 0, %v201
  %v204 = vcosq.f32.pop %v202
  %v205 = vsinq.f32.pop %v202
  %vm206 = vweird.f32 %v9
  %v207 = vadd.s32 %v203, 3
  %v208 = vand.u32 %v207, 3
  %vm209 = vcmp.lt.s32.totalorder %v208, 2
  %vm210 = vcmp.eq.s32.totalorder %v208, 0
  %v211 = vxor.u32 %v205, 2147483648
  %v212 = vsel %vm210, %v204, %v211
  %vm213 = vcmp.eq.s32.totalorder %v208, 2
  %v214 = vxor.u32 %v204, 2147483648
  %v215 = vsel %vm213, %v214, %v205
  %v216 = vsel %vm209, %v212, %v215
  %v217 = vsel %vm206, nan, %v216
  %v218 = vadd.f32 %v113, %v113
  %v219 = vmul.f32 %v218, %v113
  %v220 = vsub.f32 %v219, 1.0
  %v221 = vmul.f32 %v218, %v217
  %v222 = vmul.f32 %v218, %v220
  %v223 = vsub.f32 %v222, %v113
  %v224 = vmul.f32 %v218, %v221
  %v225 = vsub.f32 %v224, %v217
  %v227 = vlaneseq
  %v228 = vshrl.u32 %v227, 7
  %v229 = vsub.s32 0, %v228
  %v230 = vrot.slane %v113, %v229
  %v233 = vlaneseq
  %v234 = vshrl.u32 %v233, 7
  %v235 = vsub.s32 0, %v234
  %v236 = vrot.slane %v220, %v235
  %v239 = vlaneseq
  %v240 = vshrl.u32 %v239, 7
  %v241 = vsub.s32 0, %v240
  %v242 = vrot.slane %v223, %v241
  %v245 = vlaneseq
  %v246 = vshrl.u32 %v245, 7
  %v247 = vsub.s32 0, %v246
  %v248 = vrot.slane %v217, %v247
  %v251 = vlaneseq
  %v252 = vshrl.u32 %v251, 7
  %v253 = vsub.s32 0, %v252
  %v254 = vrot.slane %v221, %v253
  %vm256 = vcmask 1040384
  %v257 = vsel %vm256, %v10, 1.0
  %vm258 = vcmask 1041408
  %v259 = vsel %vm258, %v257, %v230
  %vm260 = vcmask 1042432
  %v261 = vsel %vm260, %v259, %v236
  %vm262 = vcmask 1043456
  %v263 = vsel %vm262, %v261, %v242
  %vm264 = vcmask 1044480
  %v265 = vsel %vm264, %v263, 0.0
  %vm266 = vcmask 1045504
  %v267 = vsel %vm266, %v265, %v248
  %vm268 = vcmask 1046528
  %v269 = vsel %vm268, %v267, %v254
  %vm270 = vcmask 130048
  %271 = vst.msk [vmem:[%s1] sm:$0xff] %vm270, %v269
  %vm272 = vcmask 122880
  %273 = vst.msk [vmem:[%s1 + $0x8] sm:$0x1] %vm272, %v225
  // Predicated region
  $region6: #{_time_embedding_impl.1} parent=0 // pred_check
    _
  $region7: #{_time_embedding_impl.1} parent=0 // pred_check_branch
    %275 = sbr.rel (0) target = $region9
  $region8: #{_time_embedding_impl.1} parent=0 // pred_region
    _
  $region9: #{_time_embedding_impl.1} parent=0 // pred_fallthru
    _
  // Predicated region
  $region10: #{_time_embedding_impl.1} parent=0 // pred_check
    _
  $region11: #{_time_embedding_impl.1} parent=0 // pred_check_branch
    %277 = sbr.rel (0) target = $region13
  $region12: #{_time_embedding_impl.1} parent=0 // pred_region
    _
  $region13: #{_time_embedding_impl.1} parent=0 // pred_fallthru
    _

</llo_original>
